<compile_context>
chip_gen: v7x
topology: tpu7x:2x2x1
jax: 0.10.0
libtpu: 0.0.40
codegen_flags: <defaults>
</compile_context>

<pallas_src>
import functools

import jax
import jax.numpy as jnp
from jax.experimental import pallas as pl
from jax.experimental.pallas import tpu as pltpu


def _dice_stats_kernel(p_ref, t_ref, out_ref, acc_i, acc_y, acc_z, *,
                       d_total, softmax, need_mask):
    """Accumulates per-class [intersect, y_sum, z_sum] over the D grid axis."""
    k = pl.program_id(1)
    last = pl.num_programs(1) - 1

    @pl.when(k == 0)
    def _():
        acc_i[...] = jnp.zeros_like(acc_i)
        acc_y[...] = jnp.zeros_like(acc_y)
        acc_z[...] = jnp.zeros_like(acc_z)

    tn, c, tk = p_ref.shape

    def accumulate(masked):
        x = p_ref[...].astype(jnp.float32)           # (tn, C, tk)
        t = t_ref[...].astype(jnp.int32)             # (tn, 1, tk)

        if softmax:
            # Fused softmax over the class (sublane) axis, f32 throughout
            # (v5e has no bf16 VPU/EUP).  exp runs on the EUP slot.
            m = jnp.max(x, axis=1, keepdims=True)
            e = jnp.exp(x - m)
            x = e / jnp.sum(e, axis=1, keepdims=True)

        if masked:
            # Tail tile only (gated by pl.when below): suppress lanes past
            # the true D extent with selects, so garbage / NaN in the padded
            # region (including post-softmax NaNs) is harmless.
            lane = jax.lax.broadcasted_iota(jnp.int32, (tn, 1, tk), 2) + k * tk
            valid = lane < d_total                    # (tn, 1, tk)
            x = jnp.where(valid, x, 0.0)
            t = jnp.where(valid, t, -1)               # -1 matches no class

        # On-the-fly one-hot as a boolean compare; no f32 one-hot tensor.
        cls = jax.lax.broadcasted_iota(jnp.int32, (tn, c, tk), 1)
        eq = t == cls                                 # (tn, C, tk) bool

        # Lane-wise partials; reduce only the batch-row axis (pure VPU adds).
        acc_i[...] += jnp.sum(jnp.where(eq, x, 0.0), axis=0)    # intersect
        acc_y[...] += jnp.sum(jnp.where(eq, 1.0, 0.0), axis=0)  # y_sum
        acc_z[...] += jnp.sum(x * x, axis=0)                    # z_sum

    if need_mask:
        @pl.when(k < last)
        def _():
            accumulate(False)

        @pl.when(k == last)
        def _():
            accumulate(True)
    else:
        accumulate(False)

    @pl.when(k == last)
    def _():
        # Single cross-lane reduce per N-tile, deferred to the finalize step.
        # Write the three stat columns directly (no lane-axis concatenate).
        out_ref[0, :, 0:1] = jnp.sum(acc_i[...], axis=-1, keepdims=True)
        out_ref[0, :, 1:2] = jnp.sum(acc_y[...], axis=-1, keepdims=True)
        out_ref[0, :, 2:3] = jnp.sum(acc_z[...], axis=-1, keepdims=True)


def _pick_tile_n(n):
    """Largest divisor of n that is <= min(n//2, 8); guarantees >= 2 blocks on
    the 'parallel' axis whenever n >= 2 (keeps both v7x TensorCores busy)."""
    if n <= 1:
        return 1
    cap = min(n // 2, 8)
    for t in range(cap, 0, -1):
        if n % t == 0:
            return t
    return 1


def _choose_tiles(n, c, d, in_bytes, tile_d=None):
    tile_n = _pick_tile_n(n)

    # Size the D tile against a VMEM working-set budget: double-buffered
    # predict + label blocks, lane-partial accumulators, and f32 temporaries
    # (softmax intermediates, selects).  24 MiB budget + 48 MiB scoped limit
    # stays safe on v7x's 64 MiB VMEM while amortizing per-step overhead.
    budget = 24 * 1024 * 1024
    per_col = (2 * tile_n * c * in_bytes    # predict block, double buffered
               + 2 * tile_n * 4             # label block, double buffered
               + 3 * c * 4                  # accumulators
               + 6 * tile_n * c * 4)        # f32 temporaries
    tk_auto = max(128, (budget // per_col) // 128 * 128)
    tk_auto = min(tk_auto, 16384)           # v7x-safe cap (review guidance)

    tk = tk_auto if tile_d is None else max(128, (int(tile_d) // 128) * 128)
    if d <= tk:
        tk = d   # small-problem fast path: one step, full-extent block (legal)
    return tile_n, tk


def _dice_stats(pred, labels, softmax, tile_d=None):
    """pred: [N, C, D] (f32/bf16), labels: [N, 1, D] int32 -> [C, 3] f32 with
    columns [intersect, y_sum, z_sum] per class (softmax fused if requested)."""
    n, c, d = pred.shape
    in_bytes = pred.dtype.itemsize
    tile_n, tk = _choose_tiles(n, c, d, in_bytes, tile_d)
    n_tiles = n // tile_n
    kd = pl.cdiv(d, tk)

    kernel = functools.partial(_dice_stats_kernel, d_total=d, softmax=softmax,
                               need_mask=(d % tk != 0))

    stats = pl.pallas_call(
        kernel,
        out_shape=jax.ShapeDtypeStruct((n_tiles, c, 3), jnp.float32),
        grid_spec=pltpu.PrefetchScalarGridSpec(
            num_scalar_prefetch=0,
            grid=(n_tiles, kd),
            in_specs=[
                pl.BlockSpec((tile_n, c, tk), lambda i, k: (i, 0, k)),
                pl.BlockSpec((tile_n, 1, tk), lambda i, k: (i, 0, k)),
            ],
            out_specs=pl.BlockSpec((1, c, 3), lambda i, k: (i, 0, 0)),
            scratch_shapes=[
                pltpu.VMEM((c, tk), jnp.float32),
                pltpu.VMEM((c, tk), jnp.float32),
                pltpu.VMEM((c, tk), jnp.float32),
            ],
        ),
        compiler_params=pltpu.CompilerParams(
            dimension_semantics=("parallel", "arbitrary"),
            vmem_limit_bytes=48 * 1024 * 1024,
        ),
        cost_estimate=pl.CostEstimate(
            flops=(10 if softmax else 6) * n * c * d,
            transcendentals=(n * c * d) if softmax else 0,
            bytes_accessed=n * d * (c * in_bytes + 4) + n_tiles * c * 3 * 4,
        ),
    )(pred, labels)

    return jnp.sum(stats, axis=0)   # (C, 3): fold the per-N-tile partials


def dice_loss(inputs, target, n_classes, weight=None, softmax=False,
              smooth=1e-5, tile_d=None):
    """Pallas equivalent of DiceLoss.forward (softmax fused in-kernel)."""
    assert inputs.shape[1] == n_classes
    assert inputs.shape[0] == target.shape[0] and \
        inputs.shape[2:] == target.shape[1:], \
        'predict {} & target {} shape do not match'.format(inputs.shape,
                                                           target.shape)
    n, c = inputs.shape[0], inputs.shape[1]
    d = 1
    for s in inputs.shape[2:]:
        d *= s
    d = max(d, 1)

    pred = inputs.reshape(n, c, d)                       # free (row-major view)
    labels = target.reshape(n, 1, d).astype(jnp.int32)   # integer class map

    stats = _dice_stats(pred, labels, softmax=softmax, tile_d=tile_d)  # (C, 3)
    intersect, y_sum, z_sum = stats[:, 0], stats[:, 1], stats[:, 2]

    dice = (2.0 * intersect + smooth) / (z_sum + y_sum + smooth)
    per_class_loss = 1.0 - dice                          # (C,)

    if weight is None:
        w = jnp.ones((n_classes,), jnp.float32)
    else:
        w = jnp.asarray(weight, dtype=jnp.float32)
    return jnp.sum(per_class_loss * w) / n_classes


def _ref_dice_loss(inputs, target, n_classes, weight=None, softmax=False,
                   smooth=1e-5):
    """Pure-JAX mirror of the PyTorch DiceLoss.forward."""
    if softmax:
        inputs = jax.nn.softmax(inputs, axis=1)
    onehot = jnp.stack([(target == i).astype(jnp.float32)
                        for i in range(n_classes)], axis=1)
    loss = 0.0
    for i in range(n_classes):
        score = inputs[:, i].astype(jnp.float32)
        tgt = onehot[:, i]
        intersect = jnp.sum(score * tgt)
        y_sum = jnp.sum(tgt * tgt)
        z_sum = jnp.sum(score * score)
        dice = (2.0 * intersect + smooth) / (z_sum + y_sum + smooth)
        wi = 1.0 if weight is None else weight[i]
        loss = loss + (1.0 - dice) * wi
    return loss / n_classes


if __name__ == "__main__":
    key = jax.random.PRNGKey(0)
    k1, k2, k3, k4, k5, k6 = jax.random.split(key, 6)

    # Test A: standard small segmentation shapes, fused softmax, D=256.
    # N=2 -> tile_n=1, two blocks on the parallel axis (megacore path).
    N, C, H, W = 2, 4, 16, 16
    logits = jax.random.normal(k1, (N, C, H, W), dtype=jnp.float32)
    labels = jax.random.randint(k2, (N, H, W), 0, C, dtype=jnp.int32)

    out = jax.block_until_ready(dice_loss(logits, labels, n_classes=C,
                                          softmax=True))
    ref = _ref_dice_loss(logits, labels, C, softmax=True)
    assert jnp.allclose(out, ref, rtol=1e-4, atol=1e-5), (out, ref)

    # Test B: force multiple D grid steps (accumulator carry, no tail mask).
    out_b = jax.block_until_ready(dice_loss(logits, labels, n_classes=C,
                                            softmax=True, tile_d=128))
    assert jnp.allclose(out_b, ref, rtol=1e-4, atol=1e-5), (out_b, ref)

    # Test C: D = 130 (not a multiple of 128) with class weights; auto tiling
    # takes the full-extent single-block path.
    N2, C2, H2, W2 = 2, 3, 10, 13
    logits2 = jax.random.normal(k3, (N2, C2, H2, W2), dtype=jnp.float32)
    labels2 = jax.random.randint(k4, (N2, H2, W2), 0, C2, dtype=jnp.int32)
    wgt = [0.5, 1.0, 2.0]
    ref2 = _ref_dice_loss(logits2, labels2, C2, weight=wgt, softmax=True)
    out_c = jax.block_until_ready(dice_loss(logits2, labels2, n_classes=C2,
                                            weight=wgt, softmax=True))
    assert jnp.allclose(out_c, ref2, rtol=1e-4, atol=1e-5), (out_c, ref2)

    # Test D: same data with tile_d=128 -> partial final block; exercises the
    # pl.when-gated tail mask combined with the fused softmax.
    out_d = jax.block_until_ready(dice_loss(logits2, labels2, n_classes=C2,
                                            weight=wgt, softmax=True,
                                            tile_d=128))
    assert jnp.allclose(out_d, ref2, rtol=1e-4, atol=1e-5), (out_d, ref2)

    # Test E: bf16 probability inputs pass straight through (f32 accumulation
    # inside the kernel); reference uses identical bf16-rounded values.
    probs_bf16 = jax.nn.softmax(logits, axis=1).astype(jnp.bfloat16)
    out_e = jax.block_until_ready(dice_loss(probs_bf16, labels, n_classes=C,
                                            softmax=False))
    ref_e = _ref_dice_loss(probs_bf16.astype(jnp.float32), labels, C,
                           softmax=False)
    assert jnp.allclose(out_e, ref_e, rtol=1e-4, atol=1e-5), (out_e, ref_e)

    # Test F: N=4 -> tile_n=2, n_tiles=2; multi-N-tile partials folded in the
    # wrapper, plus multi-step D with fused softmax.
    N3, C3, H3, W3 = 4, 4, 8, 16
    logits3 = jax.random.normal(k5, (N3, C3, H3, W3), dtype=jnp.float32)
    labels3 = jax.random.randint(k6, (N3, H3, W3), 0, C3, dtype=jnp.int32)
    ref3 = _ref_dice_loss(logits3, labels3, C3, softmax=True)
    out_f = jax.block_until_ready(dice_loss(logits3, labels3, n_classes=C3,
                                            softmax=True, tile_d=128))
    assert jnp.allclose(out_f, ref3, rtol=1e-4, atol=1e-5), (out_f, ref3)

    print("KERNEL_OK")
</pallas_src>

<mosaic_0001>
module attributes {stable_mosaic.version = 11 : i64} {
  func.func @_dice_stats_kernel(%arg0: i32, %arg1: i32, %arg2: memref<1x4x256xf32, #tpu.memory_space<vmem>>, %arg3: memref<1x1x256xi32, #tpu.memory_space<vmem>>, %arg4: memref<1x4x3xf32, #tpu.memory_space<vmem>>, %arg5: memref<4x256xf32, #tpu.memory_space<vmem>>, %arg6: memref<4x256xf32, #tpu.memory_space<vmem>>, %arg7: memref<4x256xf32, #tpu.memory_space<vmem>>) attributes {dimension_semantics = [#tpu.dimension_semantics<parallel>, #tpu.dimension_semantics<arbitrary>], iteration_bounds = array<i64: 2, 1>, scalar_prefetch = 0 : i64, scratch_operands = 3 : i64, tpu.core_type = #tpu.core_type<tc>, window_params = [{transform_indices = @transform_0, window_bounds = array<i64: 1, 4, 256>}, {transform_indices = @transform_1, window_bounds = array<i64: 1, 1, 256>}, {transform_indices = @transform_2, window_bounds = array<i64: 1, 4, 3>}]} {
    %c0_i32 = arith.constant 0 : i32
    %0 = arith.cmpi eq, %arg1, %c0_i32 : i32
    %1 = arith.extui %0 : i1 to i32
    %c0_i32_0 = arith.constant 0 : i32
    %2 = arith.cmpi ne, %1, %c0_i32_0 : i32
    scf.if %2 {
      %cst_27 = arith.constant 0.000000e+00 : f32
      %38 = vector.broadcast %cst_27 : f32 to vector<4x256xf32>
      %c0_28 = arith.constant 0 : index
      %c0_29 = arith.constant 0 : index
      %39 = vector.load %arg5[%c0_28, %c0_29] : memref<4x256xf32, #tpu.memory_space<vmem>>, vector<4x256xf32>
      tpu.vector_store %arg5[%c0_28, %c0_29], %38 {strides = array<i32>} : memref<4x256xf32, #tpu.memory_space<vmem>>, vector<4x256xf32>,
      %cst_30 = arith.constant 0.000000e+00 : f32
      %40 = vector.broadcast %cst_30 : f32 to vector<4x256xf32>
      %c0_31 = arith.constant 0 : index
      %c0_32 = arith.constant 0 : index
      %41 = vector.load %arg6[%c0_31, %c0_32] : memref<4x256xf32, #tpu.memory_space<vmem>>, vector<4x256xf32>
      tpu.vector_store %arg6[%c0_31, %c0_32], %40 {strides = array<i32>} : memref<4x256xf32, #tpu.memory_space<vmem>>, vector<4x256xf32>,
      %cst_33 = arith.constant 0.000000e+00 : f32
      %42 = vector.broadcast %cst_33 : f32 to vector<4x256xf32>
      %c0_34 = arith.constant 0 : index
      %c0_35 = arith.constant 0 : index
      %43 = vector.load %arg7[%c0_34, %c0_35] : memref<4x256xf32, #tpu.memory_space<vmem>>, vector<4x256xf32>
      tpu.vector_store %arg7[%c0_34, %c0_35], %42 {strides = array<i32>} : memref<4x256xf32, #tpu.memory_space<vmem>>, vector<4x256xf32>,
    } else {
    }
    %c0 = arith.constant 0 : index
    %c0_1 = arith.constant 0 : index
    %c0_2 = arith.constant 0 : index
    %3 = vector.load %arg2[%c0, %c0_1, %c0_2] : memref<1x4x256xf32, #tpu.memory_space<vmem>>, vector<1x4x256xf32>
    %c0_3 = arith.constant 0 : index
    %c0_4 = arith.constant 0 : index
    %c0_5 = arith.constant 0 : index
    %4 = vector.load %arg3[%c0_3, %c0_4, %c0_5] : memref<1x1x256xi32, #tpu.memory_space<vmem>>, vector<1x1x256xi32>
    %cst = arith.constant dense<0xFF800000> : vector<1x256xf32>
    %5 = vector.multi_reduction <maximumf>, %3, %cst [1] : vector<1x4x256xf32> to vector<1x256xf32>
    %6 = vector.shape_cast %5 : vector<1x256xf32> to vector<1x1x256xf32>
    %7 = vector.broadcast %6 : vector<1x1x256xf32> to vector<1x4x256xf32>
    %8 = arith.subf %3, %7 : vector<1x4x256xf32>
    %9 = math.exp %8 : vector<1x4x256xf32>
    %cst_6 = arith.constant dense<0.000000e+00> : vector<1x256xf32>
    %10 = vector.multi_reduction <add>, %9, %cst_6 [1] : vector<1x4x256xf32> to vector<1x256xf32>
    %11 = vector.shape_cast %10 : vector<1x256xf32> to vector<1x1x256xf32>
    %12 = vector.broadcast %11 : vector<1x1x256xf32> to vector<1x4x256xf32>
    %13 = arith.divf %9, %12 : vector<1x4x256xf32>
    %14 = tpu.iota {dimensions = array<i32: 1>} : vector<1x4x256xi32>
    %15 = vector.broadcast %4 : vector<1x1x256xi32> to vector<1x4x256xi32>
    %16 = arith.cmpi eq, %15, %14 : vector<1x4x256xi32>
    %c0_7 = arith.constant 0 : index
    %c0_8 = arith.constant 0 : index
    %17 = vector.load %arg5[%c0_7, %c0_8] : memref<4x256xf32, #tpu.memory_space<vmem>>, vector<4x256xf32>
    %cst_9 = arith.constant 0.000000e+00 : f32
    %18 = vector.broadcast %cst_9 : f32 to vector<1x4x256xf32>
    %19 = arith.select %16, %13, %18 : vector<1x4x256xi1>, vector<1x4x256xf32>
    %cst_10 = arith.constant dense<0.000000e+00> : vector<4x256xf32>
    %20 = vector.multi_reduction <add>, %19, %cst_10 [0] : vector<1x4x256xf32> to vector<4x256xf32>
    %21 = arith.addf %17, %20 : vector<4x256xf32>
    %c0_11 = arith.constant 0 : index
    %c0_12 = arith.constant 0 : index
    %22 = vector.load %arg5[%c0_11, %c0_12] : memref<4x256xf32, #tpu.memory_space<vmem>>, vector<4x256xf32>
    tpu.vector_store %arg5[%c0_11, %c0_12], %21 {strides = array<i32>} : memref<4x256xf32, #tpu.memory_space<vmem>>, vector<4x256xf32>,
    %c0_13 = arith.constant 0 : index
    %c0_14 = arith.constant 0 : index
    %23 = vector.load %arg6[%c0_13, %c0_14] : memref<4x256xf32, #tpu.memory_space<vmem>>, vector<4x256xf32>
    %cst_15 = arith.constant 1.000000e+00 : f32
    %cst_16 = arith.constant 0.000000e+00 : f32
    %24 = vector.broadcast %cst_15 : f32 to vector<1x4x256xf32>
    %25 = vector.broadcast %cst_16 : f32 to vector<1x4x256xf32>
    %26 = arith.select %16, %24, %25 : vector<1x4x256xi1>, vector<1x4x256xf32>
    %cst_17 = arith.constant dense<0.000000e+00> : vector<4x256xf32>
    %27 = vector.multi_reduction <add>, %26, %cst_17 [0] : vector<1x4x256xf32> to vector<4x256xf32>
    %28 = arith.addf %23, %27 : vector<4x256xf32>
    %c0_18 = arith.constant 0 : index
    %c0_19 = arith.constant 0 : index
    %29 = vector.load %arg6[%c0_18, %c0_19] : memref<4x256xf32, #tpu.memory_space<vmem>>, vector<4x256xf32>
    tpu.vector_store %arg6[%c0_18, %c0_19], %28 {strides = array<i32>} : memref<4x256xf32, #tpu.memory_space<vmem>>, vector<4x256xf32>,
    %c0_20 = arith.constant 0 : index
    %c0_21 = arith.constant 0 : index
    %30 = vector.load %arg7[%c0_20, %c0_21] : memref<4x256xf32, #tpu.memory_space<vmem>>, vector<4x256xf32>
    %31 = arith.mulf %13, %13 : vector<1x4x256xf32>
    %cst_22 = arith.constant dense<0.000000e+00> : vector<4x256xf32>
    %32 = vector.multi_reduction <add>, %31, %cst_22 [0] : vector<1x4x256xf32> to vector<4x256xf32>
    %33 = arith.addf %30, %32 : vector<4x256xf32>
    %c0_23 = arith.constant 0 : index
    %c0_24 = arith.constant 0 : index
    %34 = vector.load %arg7[%c0_23, %c0_24] : memref<4x256xf32, #tpu.memory_space<vmem>>, vector<4x256xf32>
    tpu.vector_store %arg7[%c0_23, %c0_24], %33 {strides = array<i32>} : memref<4x256xf32, #tpu.memory_space<vmem>>, vector<4x256xf32>,
    %c0_i32_25 = arith.constant 0 : i32
    %35 = arith.cmpi eq, %arg1, %c0_i32_25 : i32
    %36 = arith.extui %35 : i1 to i32
    %c0_i32_26 = arith.constant 0 : i32
    %37 = arith.cmpi ne, %36, %c0_i32_26 : i32
    scf.if %37 {
      %c0_27 = arith.constant 0 : index
      %c0_28 = arith.constant 0 : index
      %38 = vector.load %arg5[%c0_27, %c0_28] : memref<4x256xf32, #tpu.memory_space<vmem>>, vector<4x256xf32>
      %cst_29 = arith.constant dense<0.000000e+00> : vector<4xf32>
      %39 = vector.multi_reduction <add>, %38, %cst_29 [1] : vector<4x256xf32> to vector<4xf32>
      %40 = vector.shape_cast %39 : vector<4xf32> to vector<4x1xf32>
      %c0_30 = arith.constant 0 : index
      %c0_31 = arith.constant 0 : index
      %c0_32 = arith.constant 0 : index
      %41 = vector.load %arg4[%c0_30, %c0_31, %c0_32] : memref<1x4x3xf32, #tpu.memory_space<vmem>>, vector<1x4x1xf32>
      %42 = vector.shape_cast %41 : vector<1x4x1xf32> to vector<4x1xf32>
      %43 = vector.shape_cast %40 : vector<4x1xf32> to vector<1x4x1xf32>
      tpu.vector_store %arg4[%c0_30, %c0_31, %c0_32], %43 {strides = array<i32>} : memref<1x4x3xf32, #tpu.memory_space<vmem>>, vector<1x4x1xf32>,
      %c0_33 = arith.constant 0 : index
      %c0_34 = arith.constant 0 : index
      %44 = vector.load %arg6[%c0_33, %c0_34] : memref<4x256xf32, #tpu.memory_space<vmem>>, vector<4x256xf32>
      %cst_35 = arith.constant dense<0.000000e+00> : vector<4xf32>
      %45 = vector.multi_reduction <add>, %44, %cst_35 [1] : vector<4x256xf32> to vector<4xf32>
      %46 = vector.shape_cast %45 : vector<4xf32> to vector<4x1xf32>
      %c0_36 = arith.constant 0 : index
      %c0_37 = arith.constant 0 : index
      %c1 = arith.constant 1 : index
      %47 = vector.load %arg4[%c0_36, %c0_37, %c1] : memref<1x4x3xf32, #tpu.memory_space<vmem>>, vector<1x4x1xf32>
      %48 = vector.shape_cast %47 : vector<1x4x1xf32> to vector<4x1xf32>
      %49 = vector.shape_cast %46 : vector<4x1xf32> to vector<1x4x1xf32>
      tpu.vector_store %arg4[%c0_36, %c0_37, %c1], %49 {strides = array<i32>} : memref<1x4x3xf32, #tpu.memory_space<vmem>>, vector<1x4x1xf32>,
      %c0_38 = arith.constant 0 : index
      %c0_39 = arith.constant 0 : index
      %50 = vector.load %arg7[%c0_38, %c0_39] : memref<4x256xf32, #tpu.memory_space<vmem>>, vector<4x256xf32>
      %cst_40 = arith.constant dense<0.000000e+00> : vector<4xf32>
      %51 = vector.multi_reduction <add>, %50, %cst_40 [1] : vector<4x256xf32> to vector<4xf32>
      %52 = vector.shape_cast %51 : vector<4xf32> to vector<4x1xf32>
      %c0_41 = arith.constant 0 : index
      %c0_42 = arith.constant 0 : index
      %c2 = arith.constant 2 : index
      %53 = vector.load %arg4[%c0_41, %c0_42, %c2] : memref<1x4x3xf32, #tpu.memory_space<vmem>>, vector<1x4x1xf32>
      %54 = vector.shape_cast %53 : vector<1x4x1xf32> to vector<4x1xf32>
      %55 = vector.shape_cast %52 : vector<4x1xf32> to vector<1x4x1xf32>
      tpu.vector_store %arg4[%c0_41, %c0_42, %c2], %55 {strides = array<i32>} : memref<1x4x3xf32, #tpu.memory_space<vmem>>, vector<1x4x1xf32>,
    } else {
    }
    return
  }
  func.func @transform_0(%arg0: i32, %arg1: i32) -> (i32, i32, i32) {
    %c0_i32 = arith.constant 0 : i32
    %c0_i32_0 = arith.constant 0 : i32
    return %arg0, %c0_i32, %arg1 : i32, i32, i32
  }
  func.func @transform_1(%arg0: i32, %arg1: i32) -> (i32, i32, i32) {
    %c0_i32 = arith.constant 0 : i32
    %c0_i32_0 = arith.constant 0 : i32
    return %arg0, %c0_i32, %arg1 : i32, i32, i32
  }
  func.func @transform_2(%arg0: i32, %arg1: i32) -> (i32, i32, i32) {
    %c0_i32 = arith.constant 0 : i32
    %c0_i32_0 = arith.constant 0 : i32
    %c0_i32_1 = arith.constant 0 : i32
    return %arg0, %c0_i32, %c0_i32_0 : i32, i32, i32
  }
}

</mosaic_0001>

<llo_original>
// kernel: tpu_custom_call.1
$region0: #{tpu_custom_call.1}
  #allocation0 [shape = 'u32[]', space=smem, size = 0x4, offset = 0x4, fixed_abs, tag = 'smem constant byte address 0x4 - core index']
  #allocation1 [shape = 'u32[144,128]{1,0:T(1,128)}', space=vmem, size = 0x12000, scoped, tag = 'internal scratch']
  #allocation2 [shape = 'f32[4,256]{1,0:T(4,128)}', space=vmem, size = 0x1000, scoped, tag = 'scratch operand']
  #allocation3 [shape = 'f32[4,256]{1,0:T(4,128)}', space=vmem, size = 0x1000, scoped, tag = 'scratch operand']
  #allocation4 [shape = 'f32[4,256]{1,0:T(4,128)}', space=vmem, size = 0x1000, scoped, tag = 'scratch operand']
  %s0 = inlined_call_operand.hbm [shape: f32[2,4,256], index: 0, kind: input, shape index: {}]
  %s1 = inlined_call_operand.hbm [shape: s32[2,1,256], index: 1, kind: input, shape index: {}]
  %s2 = inlined_call_operand.vmem [shape: f32[2,4,3], index: 2, kind: output, shape index: {}]
  %s3 = sld [smem:[#allocation0]]
  $region57: #{tpu_custom_call.1} parent=0
    _
  %s5 = ssub.s32 1, %s3
  %s6 = scalar_select 0, %s5, %s3
  $region1: #{tpu_custom_call.1} parent=0
    #allocation5 [shape = 'u8[8192]{0}', space=vmem, size = 0x2000, scoped, tag = 'input window, operand 0']
    #allocation6 [shape = 's32[2]{0}', space=sflag, size = 0x8, scoped, tag = 'scoped memory for tpu_custom_call.1']
    #allocation7 [shape = 'u8[2048]{0}', space=vmem, size = 0x800, scoped, tag = 'input window, operand 1']
    #allocation8 [shape = 's32[2]{0}', space=sflag, size = 0x8, scoped, tag = 'scoped memory for tpu_custom_call.1']
    %7 = vsyncpa [#allocation6], 0
    %s8 = scalar_lea.sflag [#allocation6], 1
    %9 = vsyncpa %s8, 0
    %10 = vsyncpa [#allocation8], 0
    %s11 = scalar_lea.sflag [#allocation8], 1
    %12 = vsyncpa %s11, 0
    loop: start=0, step=1, limit=4
    $region2: #{tpu_custom_call.1} parent=1 // loop_pre_header
      _
    $region3: #{tpu_custom_call.1} parent=1 // loop_header
      %s14 = sphi 0, %s18
      %p15 = scmp.ge.s32.totalorder %s14, 4
      %s21 = sphi 0, %s33
      %s22 = sphi 0, %s29
      %s23 = sphi 0, %s21
      %s24 = sphi 0, %s22
      %s25 = sphi 0, %s23
      %s26 = sphi 0, %s24
      %s38 = sphi 0, %s40
      %s41 = sphi 0, %s38
      %s42 = sphi 0, %s41
      %s58 = sphi 0, %s42
      %s66 = sphi 0, %s68
      %s69 = sphi 0, %s66
      %s70 = sphi 0, %s69
      %s86 = sphi 0, %s70
      %s92 = sphi 0, %s94
      %s95 = sphi 0, %s92
      %s96 = sphi 0, %s95
      %s112 = sphi 0, %s96
    $region4: #{tpu_custom_call.1} parent=1 // loop_header_branch
      %17 = sbr.rel (%p15) target = $region8
    $region5: #{tpu_custom_call.1} parent=1 // loop_body
      %s19 = ssub.s32 %s14, 1
      %s20 = ssub.s32 %s14, 2
      %s27 = sadd.s32 1, %s22
      %p28 = scmp.ge.s32.totalorder %s27, 1
      %s29 = scalar_select %p28, 0, %s27
      %s30 = sadd.s32 1, %s21
      %s31 = scalar_select %p28, %s30, %s21
      %p32 = scmp.ge.s32.totalorder %s31, 2
      %s33 = scalar_select %p32, 0, %s31
      %s34 = ssub.s32 %s21, %s33
      %s35 = ssub.s32 %s22, %s29
      %s36 = sor.u32 %s34, %s35
      %p37 = scmp.eq.s32.totalorder %s36, 0
      %s39 = sadd.s32 %s38, 1
      %s40 = scalar_select %p37, %s38, %s39
      %p43 = pneg %p37
      %p44 = scmp.eq.s32.totalorder %s14, 1
      %p45 = por %p43, %p44
      %p46 = scmp.ne.s32.totalorder %s38, %s41
      %p47 = scmp.eq.s32.totalorder %s14, 0
      %p48 = por %p46, %p47
      %p49 = scmp.ne.s32.totalorder %s38, %s41
      %p50 = scmp.eq.s32.totalorder %s19, 1
      %p51 = por %p49, %p50
      %p52 = scmp.ne.s32.totalorder %s41, %s42
      %p53 = scmp.eq.s32.totalorder %s19, 0
      %p54 = por %p52, %p53
      %p55 = scmp.ne.s32.totalorder %s41, %s42
      %p56 = scmp.eq.s32.totalorder %s20, 1
      %p57 = por %p55, %p56
      %p59 = scmp.ne.s32.totalorder %s42, %s58
      %p60 = scmp.eq.s32.totalorder %s20, 0
      %p61 = por %p59, %p60
      %s62 = ssub.s32 %s21, %s33
      %s63 = ssub.s32 %s22, %s29
      %s64 = sor.u32 %s62, %s63
      %p65 = scmp.eq.s32.totalorder %s64, 0
      %s67 = sadd.s32 %s66, 1
      %s68 = scalar_select %p65, %s66, %s67
      %p71 = pneg %p65
      %p72 = scmp.eq.s32.totalorder %s14, 1
      %p73 = por %p71, %p72
      %p74 = scmp.ne.s32.totalorder %s66, %s69
      %p75 = scmp.eq.s32.totalorder %s14, 0
      %p76 = por %p74, %p75
      %p77 = scmp.ne.s32.totalorder %s66, %s69
      %p78 = scmp.eq.s32.totalorder %s19, 1
      %p79 = por %p77, %p78
      %p80 = scmp.ne.s32.totalorder %s69, %s70
      %p81 = scmp.eq.s32.totalorder %s19, 0
      %p82 = por %p80, %p81
      %p83 = scmp.ne.s32.totalorder %s69, %s70
      %p84 = scmp.eq.s32.totalorder %s20, 1
      %p85 = por %p83, %p84
      %p87 = scmp.ne.s32.totalorder %s70, %s86
      %p88 = scmp.eq.s32.totalorder %s20, 0
      %p89 = por %p87, %p88
      %s90 = ssub.s32 %s21, %s33
      %p91 = scmp.eq.s32.totalorder %s90, 0
      %s93 = sadd.s32 %s92, 1
      %s94 = scalar_select %p91, %s92, %s93
      %p97 = pneg %p91
      %p98 = scmp.eq.s32.totalorder %s14, 1
      %p99 = por %p97, %p98
      %p100 = scmp.ne.s32.totalorder %s92, %s95
      %p101 = scmp.eq.s32.totalorder %s14, 0
      %p102 = por %p100, %p101
      %p103 = scmp.ne.s32.totalorder %s92, %s95
      %p104 = scmp.eq.s32.totalorder %s19, 1
      %p105 = por %p103, %p104
      %p106 = scmp.ne.s32.totalorder %s95, %s96
      %p107 = scmp.eq.s32.totalorder %s19, 0
      %p108 = por %p106, %p107
      %p109 = scmp.ne.s32.totalorder %s95, %s96
      %p110 = scmp.eq.s32.totalorder %s20, 1
      %p111 = por %p109, %p110
      %p113 = scmp.ne.s32.totalorder %s96, %s112
      %p114 = scmp.eq.s32.totalorder %s20, 0
      %p115 = por %p113, %p114
      %p116 = scmp.le.s32.totalorder 1, %s14
      %p117 = scmp.lt.s32.totalorder %s14, 3
      %p118 = pnand %p116, %p117
      %p119 = pneg %p118
      // Predicated region
      $region9: #{tpu_custom_call.1} parent=5 // pred_check
        _
      $region10: #{tpu_custom_call.1} parent=5 // pred_check_branch
        %121 = sbr.rel (%p118) target = $region12
      $region11: #{tpu_custom_call.1} parent=5 // pred_region
        %s122 = ssub.s32 %s14, 1
      $region12: #{tpu_custom_call.1} parent=5 // pred_fallthru
        _
      %p123 = scmp.lt.s32.totalorder %s14, 2
      // Predicated region
      $region13: #{tpu_custom_call.1} parent=5 // pred_check
        %p124 = pneg %p123
      $region14: #{tpu_custom_call.1} parent=5 // pred_check_branch
        %126 = sbr.rel (%p124) target = $region16
      $region15: #{tpu_custom_call.1} parent=5 // pred_region
        // Predicated region
        $region17: #{tpu_custom_call.1} parent=15 // pred_check
          %p127 = pneg %p48
        $region18: #{tpu_custom_call.1} parent=15 // pred_check_branch
          %129 = sbr.rel (%p127) target = $region20
        $region19: #{tpu_custom_call.1} parent=15 // pred_region
          %s130 = sand.u32 %s38, 1
          %s131 = scalar_lea.sflag [#allocation6], %s130
          %s132 = sand.u32 %s38, 1
          %s133 = smul.addr %s132, 8
          %s134 = scalar_lea.vmem [#allocation5], %s133
          %s135 = smul.u32 2, %s22
          %s137 = ssub.s32 128, 128
          %138 = vsyncadd %s131, %s137
          %s139 = smul.addr %s21, 2
          %s140 = sadd.s32 %s135, %s139
          %s141 = smul.addr %s140, 64
          %s142 = scalar_lea.hbm %s0, %s141
          %s144 = sshll.u32 %s134, 4
          %s145 = int_to_ptr.vmem [resolvable:$true] %s144
          %147 = dma.hbm_to_vmem [thread:$0]  %s142, 128, %s145, %s131
        $region20: #{tpu_custom_call.1} parent=15 // pred_fallthru
          _
        // Predicated region
        $region21: #{tpu_custom_call.1} parent=15 // pred_check
          %p148 = pneg %p76
        $region22: #{tpu_custom_call.1} parent=15 // pred_check_branch
          %150 = sbr.rel (%p148) target = $region24
        $region23: #{tpu_custom_call.1} parent=15 // pred_region
          %s151 = sand.u32 %s66, 1
          %s152 = scalar_lea.sflag [#allocation8], %s151
          %s153 = sand.u32 %s66, 1
          %s154 = smul.addr %s153, 2
          %s155 = scalar_lea.vmem [#allocation7], %s154
          %s156 = smul.u32 2, %s22
          %s158 = ssub.s32 32, 32
          %159 = vsyncadd %s152, %s158
          %s160 = smul.addr %s21, 2
          %s161 = sadd.s32 %s156, %s160
          %s162 = smul.addr %s161, 16
          %s163 = scalar_lea.hbm %s1, %s162
          %s165 = sshll.u32 %s155, 4
          %s166 = int_to_ptr.vmem [resolvable:$true] %s165
          %168 = dma.hbm_to_vmem [thread:$0]  %s163, 32, %s166, %s152
        $region24: #{tpu_custom_call.1} parent=15 // pred_fallthru
          _
      $region16: #{tpu_custom_call.1} parent=5 // pred_fallthru
        _
      %p169 = scmp.le.s32.totalorder 1, %s14
      %p170 = scmp.lt.s32.totalorder %s14, 3
      %p171 = pnand %p169, %p170
      %p172 = pneg %p171
      // Predicated region
      $region25: #{tpu_custom_call.1} parent=5 // pred_check
        _
      $region26: #{tpu_custom_call.1} parent=5 // pred_check_branch
        %174 = sbr.rel (%p171) target = $region28
      $region27: #{tpu_custom_call.1} parent=5 // pred_region
        %s175 = ssub.s32 %s14, 1
        %s176 = sand.u32 %s41, 1
        %s177 = scalar_lea.sflag [#allocation6], %s176
        %s178 = sand.u32 %s41, 1
        %s179 = smul.addr %s178, 8
        %s180 = scalar_lea.vmem [#allocation5], %s179
        // Predicated region
        $region29: #{tpu_custom_call.1} parent=27 // pred_check
          %p181 = pneg %p54
        $region30: #{tpu_custom_call.1} parent=27 // pred_check_branch
          %183 = sbr.rel (%p181) target = $region32
        $region31: #{tpu_custom_call.1} parent=27 // pred_region
          %184 = dma.done %s177, 128
        $region32: #{tpu_custom_call.1} parent=27 // pred_fallthru
          _
        %s185 = sand.u32 %s69, 1
        %s186 = scalar_lea.sflag [#allocation8], %s185
        %s187 = sand.u32 %s69, 1
        %s188 = smul.addr %s187, 2
        %s189 = scalar_lea.vmem [#allocation7], %s188
        // Predicated region
        $region33: #{tpu_custom_call.1} parent=27 // pred_check
          %p190 = pneg %p82
        $region34: #{tpu_custom_call.1} parent=27 // pred_check_branch
          %192 = sbr.rel (%p190) target = $region36
        $region35: #{tpu_custom_call.1} parent=27 // pred_region
          %193 = dma.done %s186, 32
        $region36: #{tpu_custom_call.1} parent=27 // pred_fallthru
          _
        %s194 = sand.u32 %s41, 1
        %s195 = scalar_lea.sflag [#allocation6], %s194
        %s196 = sand.u32 %s41, 1
        %s197 = smul.addr %s196, 8
        %s198 = scalar_lea.vmem [#allocation5], %s197
        %p199 = pneg %p54
        %p200 = pneg %p51
        %s201 = sand.u32 %s69, 1
        %s202 = scalar_lea.sflag [#allocation8], %s201
        %s203 = sand.u32 %s69, 1
        %s204 = smul.addr %s203, 2
        %s205 = scalar_lea.vmem [#allocation7], %s204
        %p206 = pneg %p82
        %p207 = pneg %p79
        %p208 = pneg %p108
        %p209 = pneg %p105
        %p210 = scmp.lt.s32.totalorder %s23, 1
        %s211 = scalar_select %p210, %s23, 1
        %s212 = smul.addr %s211, 4
        %s213 = scalar_lea.vmem %s2, %s212
        %s214 = smul.u32 2, %s24
        %s215 = smul.u32 2, %s24
        %p216 = scmp.lt.s32.totalorder %s23, 1
        %s217 = scalar_select %p216, %s23, 1
        %s218 = smul.addr %s217, 4
        %s219 = scalar_lea.vmem %s2, %s218
        %p220 = scmp.eq.s32.totalorder %s24, 0
        // Predicated region
        $region37: #{tpu_custom_call.1} parent=27 // pred_check
          %p221 = pneg %p220
        $region38: #{tpu_custom_call.1} parent=27 // pred_check_branch
          %223 = sbr.rel (%p221) target = $region40
        $region39: #{tpu_custom_call.1} parent=27 // pred_region
          %224 = vst [vmem:[#allocation2] sm:$0xff] 0.0
          %225 = vst [vmem:[#allocation3] sm:$0xff] 0.0
          %226 = vst [vmem:[#allocation4] sm:$0xff] 0.0
        $region40: #{tpu_custom_call.1} parent=27 // pred_fallthru
          _
        %v227 = vld [vmem:[%s180] sm:$0xff]
        %v228 = vld [vmem:[%s189] sm:$0x3]
        %v230 = vcombine.high %v227, %v227
        %vm232 = vcmask 1043456
        %v233 = vsel %vm232, %v227, -inf
        %v234 = vrot.slane %v233, 4
        %v235 = vmax.f32 %v233, %v234
        %v236 = vrot.slane %v235, 2
        %v237 = vmax.f32 %v235, %v236
        %v238 = vrot.slane %v237, 1
        %v239 = vmax.f32 %v237, %v238
        %v240 = vsel %vm232, %v230, -inf
        %v241 = vrot.slane %v240, 4
        %v242 = vmax.f32 %v240, %v241
        %v243 = vrot.slane %v242, 2
        %v244 = vmax.f32 %v242, %v243
        %v245 = vrot.slane %v244, 1
        %v246 = vmax.f32 %v244, %v245
        %v249 = vcombine.low %v239, %v246
        %v251 = vsub.f32 %v227, %v249
        %v252 = vmul.f32 %v251, 1.442695
        %v253 = vpow.pop %v252
        %v255 = vcombine.high %v253, %v253
        %v257 = vsel %vm232, %v253, 0.0
        %v258 = vrot.slane %v257, 4
        %v259 = vadd.f32 %v257, %v258
        %v260 = vrot.slane %v259, 2
        %v261 = vadd.f32 %v259, %v260
        %v262 = vrot.slane %v261, 1
        %v263 = vadd.f32 %v261, %v262
        %v264 = vsel %vm232, %v255, 0.0
        %v265 = vrot.slane %v264, 4
        %v266 = vadd.f32 %v264, %v265
        %v267 = vrot.slane %v266, 2
        %v268 = vadd.f32 %v266, %v267
        %v269 = vrot.slane %v268, 1
        %v270 = vadd.f32 %v268, %v269
        %v273 = vcombine.low %v263, %v270
        %v275 = vrcp.pop %v273
        %v276 = vmul.f32 %v253, %v275
        %v277 = vlaneseq
        %v278 = vshrl.u32 %v277, 7
        %v279 = vlaneseq
        %v280 = vshrl.u32 %v279, 7
        %v281 = vsub.s32 0, %v280
        %v282 = vrot.slane %v228, %v281
        %v283 = vlaneseq
        %v284 = vshrl.u32 %v283, 7
        %v285 = vsub.s32 1, %v284
        %v286 = vrot.slane %v228, %v285
        %vm287 = vcmp.eq.s32.totalorder %v282, %v278
        %vm288 = vcmp.eq.s32.totalorder %v286, %v278
        %v289 = vld [vmem:[#allocation2] sm:$0xff]
        %v291 = vcombine.high %v276, %v276
        %v293 = vsel %vm287, %v276, 0.0
        %v294 = vsel %vm288, %v291, 0.0
        %v295 = vadd.f32 %v293, 0.0
        %v296 = vadd.f32 %v294, 0.0
        %v299 = vcombine.low %v295, %v296
        %v301 = vadd.f32 %v289, %v299
        %302 = vst [vmem:[#allocation2] sm:$0xff] %v301
        %v303 = vld [vmem:[#allocation3] sm:$0xff]
        %v304 = vsel %vm287, 1.0, 0.0
        %v305 = vsel %vm288, 1.0, 0.0
        %v306 = vadd.f32 %v304, 0.0
        %v307 = vadd.f32 %v305, 0.0
        %v310 = vcombine.low %v306, %v307
        %v312 = vadd.f32 %v303, %v310
        %313 = vst [vmem:[#allocation3] sm:$0xff] %v312
        %v314 = vld [vmem:[#allocation4] sm:$0xff]
        %v315 = vmul.f32 %v276, %v276
        %v316 = vadd.f32 %v315, 0.0
        %v317 = vadd.f32 %v314, %v316
        %318 = vst [vmem:[#allocation4] sm:$0xff] %v317
        // Predicated region
        $region41: #{tpu_custom_call.1} parent=27 // pred_check
          %p319 = pneg %p220
        $region42: #{tpu_custom_call.1} parent=27 // pred_check_branch
          %321 = sbr.rel (%p319) target = $region44
        $region43: #{tpu_custom_call.1} parent=27 // pred_region
          %v322 = vld [vmem:[#allocation2] sm:$0xff]
          %v324 = vcombine.high %v322, %v322
          %v326 = vsel %vm232, %v322, 0.0
          %v327 = vsel %vm232, %v324, 0.0
          %v328 = vadd.f32 %v326, %v327
          %329 = vadd.xlane.f32.xlu0 %v328
          %v330 = vpop.xlane.xlu0 %329
          %vm331 = vcmask 3072
          %332 = vst.msk [vmem:[%s219] sm:$0xf] %vm331, %v330
          %v333 = vld [vmem:[#allocation3] sm:$0xff]
          %v335 = vcombine.high %v333, %v333
          %v337 = vsel %vm232, %v333, 0.0
          %v338 = vsel %vm232, %v335, 0.0
          %v339 = vadd.f32 %v337, %v338
          %340 = vadd.xlane.f32.xlu0 %v339
          %v341 = vpop.xlane.xlu0 %340
          %vm342 = vcmask 11272
          %343 = vst.msk [vmem:[%s219] sm:$0xf] %vm342, %v341
          %v344 = vld [vmem:[#allocation4] sm:$0xff]
          %v346 = vcombine.high %v344, %v344
          %v348 = vsel %vm232, %v344, 0.0
          %v349 = vsel %vm232, %v346, 0.0
          %v350 = vadd.f32 %v348, %v349
          %351 = vadd.xlane.f32.xlu0 %v350
          %v352 = vpop.xlane.xlu0 %351
          %vm353 = vcmask 19472
          %354 = vst.msk [vmem:[%s219] sm:$0xf] %vm353, %v352
        $region44: #{tpu_custom_call.1} parent=27 // pred_fallthru
          _
        %p355 = scmp.lt.s32.totalorder %s23, 1
        %s356 = scalar_select %p355, %s23, 1
        %s357 = smul.addr %s356, 4
        %s358 = scalar_lea.vmem %s2, %s357
        // Predicated region
        $region45: #{tpu_custom_call.1} parent=27 // pred_check
          %p359 = pneg %p105
        $region46: #{tpu_custom_call.1} parent=27 // pred_check_branch
          %361 = sbr.rel (%p359) target = $region48
        $region47: #{tpu_custom_call.1} parent=27 // pred_region
          _
        $region48: #{tpu_custom_call.1} parent=27 // pred_fallthru
          _
      $region28: #{tpu_custom_call.1} parent=5 // pred_fallthru
        _
      %p362 = scmp.le.s32.totalorder 2, %s14
      // Predicated region
      $region49: #{tpu_custom_call.1} parent=5 // pred_check
        %p363 = pneg %p362
      $region50: #{tpu_custom_call.1} parent=5 // pred_check_branch
        %365 = sbr.rel (%p363) target = $region52
      $region51: #{tpu_custom_call.1} parent=5 // pred_region
        %s366 = ssub.s32 %s14, 2
        // Predicated region
        $region53: #{tpu_custom_call.1} parent=51 // pred_check
          %p367 = pneg %p111
        $region54: #{tpu_custom_call.1} parent=51 // pred_check_branch
          %369 = sbr.rel (%p367) target = $region56
        $region55: #{tpu_custom_call.1} parent=51 // pred_region
          %p370 = scmp.lt.s32.totalorder %s25, 1
          %s371 = scalar_select %p370, %s25, 1
          %s372 = smul.addr %s371, 4
          %s373 = scalar_lea.vmem %s2, %s372
        $region56: #{tpu_custom_call.1} parent=51 // pred_fallthru
          _
      $region52: #{tpu_custom_call.1} parent=5 // pred_fallthru
        _
    $region6: #{tpu_custom_call.1} parent=1 // loop_footer
      %s18 = sadd.s32 1, %s14
    $region7: #{tpu_custom_call.1} parent=1 // loop_footer_branch
      %13 = sbr.rel target = $region3
    $region8: #{tpu_custom_call.1} parent=1 // loop_exit
      _
    %374 = vsyncpa [#allocation6], 1
    %s375 = scalar_lea.sflag [#allocation6], 1
    %376 = vsyncpa %s375, 1
    %377 = vsyncpa [#allocation8], 1
    %s378 = scalar_lea.sflag [#allocation8], 1
    %379 = vsyncpa %s378, 1

</llo_original>
